<compile_context>
chip_gen: v7x
topology: tpu7x:2x2x1
jax: 0.10.0
libtpu: 0.0.40
codegen_flags: <defaults>
</compile_context>

<pallas_src>
import functools

import numpy as np
import jax
import jax.numpy as jnp
from jax.experimental import pallas as pl
from jax.experimental.pallas import tpu as pltpu

_LANES = 128
_LABEL_DTYPES = (jnp.int8, jnp.int16, jnp.int32, jnp.uint8, jnp.uint16,
                 jnp.uint32)


def _round_down(n, m):
    return (n // m) * m


def _round_up(n, m):
    return ((n + m - 1) // m) * m


# --------------------------------------------------------------------------- #
# Kernel
# --------------------------------------------------------------------------- #
def _sums_kernel(x_ref, y_ref, o0_ref, o1_ref, o2_ref, *,
                 hw, row_tile, acc_rows, n_inner,
                 square, labels, nonlin, any_ragged, c):
    """Accumulate spatial partial sums over the inner (reduction) grid axis.

    Block shapes (B and outer-split dims squeezed away):
      x_ref  : (C, row_tile, 128)   predictions, native dtype
      y_ref  : (C, row_tile, 128)   one-hot / soft targets (native dtype), or
               (row_tile, 128)      integer class labels when labels=True
      o*_ref : (C, acc_rows, 128)   f32 accumulators, resident across the inner
                                    grid axis.

    square=False -> o0 = sum(x), o1 = sum(y), o2 = sum(x*y)
    square=True  -> o0 = sum(tp^2), o1 = sum(fp^2), o2 = sum(fn^2)
    """
    o = pl.program_id(1)
    i = pl.program_id(2)
    blk = o * n_inner + i          # global row-block index (may exceed n_rb-1)

    @pl.when(i == 0)
    def _():
        o0_ref[...] = jnp.zeros_like(o0_ref)
        o1_ref[...] = jnp.zeros_like(o1_ref)
        o2_ref[...] = jnp.zeros_like(o2_ref)

    groups = row_tile // acc_rows

    def fold(v):
        # (C, row_tile, 128) -> (C, acc_rows, 128).  The reshape keeps every
        # (8, 128) sub-tile intact, so the sum is pure vreg-wise VALU adds.
        if groups == 1:
            return v
        return v.reshape(c, groups, acc_rows, _LANES).sum(axis=1)

    def contributions(valid):
        x = x_ref[...].astype(jnp.float32)                   # (C, row_tile, 128)
        if nonlin == "softmax":
            m = jnp.max(x, axis=0, keepdims=True)            # over channels
            e = jnp.exp(x - m)                               # EUP slot
            x = e / jnp.sum(e, axis=0, keepdims=True)
        elif nonlin == "sigmoid":
            x = jax.nn.sigmoid(x)
        if labels:
            lab = y_ref[...].astype(jnp.int32)               # (row_tile, 128)
            cls = jax.lax.broadcasted_iota(jnp.int32, (c, row_tile, _LANES), 0)
            y = (lab[None] == cls).astype(jnp.float32)       # in-kernel one-hot
        else:
            y = y_ref[...].astype(jnp.float32)
        if valid is not None:
            # Out-of-range rows / padded lanes contribute exactly zero; this
            # also stops NaN/Inf garbage from propagating.
            x = jnp.where(valid, x, 0.0)
            y = jnp.where(valid, y, 0.0)
        if not square:
            return x, y, x * y
        if labels:
            # Hard targets (y in {0,1}): (x*y)^2 = x^2*y, (x*(1-y))^2 = x^2*(1-y),
            # ((1-x)*y)^2 = (1-x)^2*y  -> fewer VALU ops.
            x2 = x * x
            omx2 = (1.0 - x) * (1.0 - x)
            return x2 * y, x2 * (1.0 - y), omx2 * y
        tp_e = x * y
        fp_e = x * (1.0 - y)
        fn_e = (1.0 - x) * y
        return tp_e * tp_e, fp_e * fp_e, fn_e * fn_e

    def accumulate(valid):
        c0, c1, c2 = contributions(valid)
        o0_ref[...] += fold(c0)
        o1_ref[...] += fold(c1)
        o2_ref[...] += fold(c2)

    if not any_ragged:
        accumulate(None)
    else:
        # Only the last (partial) block and clamped overflow blocks pay for the
        # mask; every other step runs the mask-free fast path.
        need_mask = (blk + 1) * (row_tile * _LANES) > hw

        @pl.when(jnp.logical_not(need_mask))
        def _():
            accumulate(None)

        @pl.when(need_mask)
        def _():
            row = jax.lax.broadcasted_iota(jnp.int32, (c, row_tile, _LANES), 1)
            lane = jax.lax.broadcasted_iota(jnp.int32, (c, row_tile, _LANES), 2)
            flat = (blk * row_tile + row) * _LANES + lane
            accumulate(flat < hw)


# --------------------------------------------------------------------------- #
# pallas_call wrapper
# --------------------------------------------------------------------------- #
def _choose_row_tile(rows, per_row_bytes, budget_bytes, hw_splits, row_tile):
    if row_tile is None:
        cap = max(8, _round_down(budget_bytes // per_row_bytes, 8))
        want = max(8, _round_up(pl.cdiv(rows, max(1, int(hw_splits))), 8))
        row_tile = min(cap, want)
    row_tile = min(int(row_tile), rows)
    if row_tile < rows:
        assert row_tile % 8 == 0, "row_tile must be a multiple of 8"
    return row_tile


def _tp_fp_fn_sums(x4, y4, *, hw, square, labels, nonlin,
                   row_tile=None, hw_splits=2,
                   input_budget_bytes=16 * 1024 * 1024):
    """x4: (B, C, rows, 128) predictions; y4: (B, C or 1, rows, 128) targets.

    Returns three (B, C) f32 spatial sums (see kernel docstring).
    """
    B, C, rows, lanes = (int(s) for s in x4.shape)
    assert lanes == _LANES

    # Bytes streamed per 128-lane row (both pipeline buffers, x + y).
    y_row = _LANES * (y4.dtype.itemsize if labels else C * y4.dtype.itemsize)
    per_row = 2 * C * _LANES * x4.dtype.itemsize + 2 * y_row

    row_tile = _choose_row_tile(rows, per_row, input_budget_bytes, hw_splits,
                                row_tile)
    acc_rows = 8 if row_tile % 8 == 0 else row_tile

    n_rb = pl.cdiv(rows, row_tile)
    n_outer = max(1, min(int(hw_splits), n_rb))   # megacore split of the HW axis
    n_inner = pl.cdiv(n_rb, n_outer)
    any_ragged = (rows * _LANES != hw) or (n_outer * n_inner * row_tile != rows)

    if n_outer * n_inner == n_rb:
        def blk_idx(o, i):
            return o * n_inner + i
    else:
        last = n_rb - 1

        def blk_idx(o, i):
            # Overflow steps re-read the last valid block; the kernel masks
            # them to a zero contribution.
            return jnp.minimum(o * n_inner + i, last)

    x_spec = pl.BlockSpec((None, C, row_tile, _LANES),
                          lambda b, o, i: (b, 0, blk_idx(o, i), 0))
    if labels:
        y_spec = pl.BlockSpec((None, None, row_tile, _LANES),
                              lambda b, o, i: (b, 0, blk_idx(o, i), 0))
    else:
        y_spec = pl.BlockSpec((None, C, row_tile, _LANES),
                              lambda b, o, i: (b, 0, blk_idx(o, i), 0))
    out_spec = pl.BlockSpec((None, None, C, acc_rows, _LANES),
                            lambda b, o, i: (b, o, 0, 0, 0))

    out_shape = [jax.ShapeDtypeStruct((B, n_outer, C, acc_rows, _LANES),
                                      jnp.float32)] * 3

    kernel = functools.partial(
        _sums_kernel, hw=hw, row_tile=row_tile, acc_rows=acc_rows,
        n_inner=n_inner, square=square, labels=labels, nonlin=nonlin,
        any_ragged=any_ragged, c=C)

    x_blk = C * row_tile * _LANES * x4.dtype.itemsize
    y_blk = (1 if labels else C) * row_tile * _LANES * y4.dtype.itemsize
    acc_blk = C * acc_rows * _LANES * 4
    vmem_limit = max(32 * 1024 * 1024,
                     int(1.25 * (2 * (x_blk + y_blk) + 6 * acc_blk)) + (2 << 20))

    o0, o1, o2 = pl.pallas_call(
        kernel,
        out_shape=out_shape,
        grid_spec=pltpu.PrefetchScalarGridSpec(
            num_scalar_prefetch=0,
            grid=(B, n_outer, n_inner),
            in_specs=[x_spec, y_spec],
            out_specs=[out_spec, out_spec, out_spec],
        ),
        compiler_params=pltpu.CompilerParams(
            dimension_semantics=("parallel", "parallel", "arbitrary"),
            vmem_limit_bytes=vmem_limit,
        ),
    )(x4, y4)

    # Tiny epilogue: (B, n_outer, C, acc_rows, 128) -> (B, C).
    red = (1, 3, 4)
    return o0.sum(red), o1.sum(red), o2.sum(red)


# --------------------------------------------------------------------------- #
# Public loss
# --------------------------------------------------------------------------- #
def _iou_loss_masked_jax(x, y, loss_mask, *, batch_dice, do_bg, smooth, square):
    # TODO(synk): loss_mask path is a pure-JAX fallback, not fused into the kernel.
    x = x.astype(jnp.float32)
    B, C = int(x.shape[0]), int(x.shape[1])
    spatial = tuple(int(s) for s in x.shape[2:])
    if y.shape == x.shape:
        y = y.astype(jnp.float32)
    else:
        lab = y.reshape((B,) + spatial).astype(jnp.int32)
        y = jax.nn.one_hot(lab, C, axis=1, dtype=jnp.float32)
    m = loss_mask.reshape((B, 1) + spatial).astype(jnp.float32)
    tp = x * y * m
    fp = x * (1.0 - y) * m
    fn = (1.0 - x) * y * m
    if square:
        tp, fp, fn = tp * tp, fp * fp, fn * fn
    axes = tuple(range(2, x.ndim))
    if batch_dice:
        axes = (0,) + axes
    tp, fp, fn = tp.sum(axes), fp.sum(axes), fn.sum(axes)
    iou = (tp + smooth) / (tp + fp + fn + smooth)
    if not do_bg:
        iou = iou[1:] if batch_dice else iou[:, 1:]
    return -iou.mean()


def iou_loss(x, y, *, apply_nonlin=None, batch_dice=False, do_bg=True,
             smooth=1.0, square=False, loss_mask=None,
             fused_nonlin=None, downcast_onehot_targets=True,
             row_tile=None, hw_splits=2,
             input_budget_bytes=16 * 1024 * 1024):
    """JAX/Pallas equivalent of IoULoss.forward(x, y, loss_mask).

    x: (B, C, *spatial) soft predictions (streamed in their native dtype; pass
       bf16 to halve prediction-side HBM traffic).
    y: same shape as x (one-hot / soft targets, as in nnU-Net's get_tp_fp_fn) or
       (B, 1, *spatial) / (B, *spatial) integer class labels (one-hot is built
       in-kernel; labels >= C yield an all-zero one-hot row).
    fused_nonlin: "softmax" or "sigmoid" to apply the nonlinearity over C inside
       the kernel (avoids materializing the activation in HBM).  If set,
       apply_nonlin is ignored.  Arbitrary apply_nonlin callables run outside.
    downcast_onehot_targets: cast float one-hot targets to bf16 before streaming
       (exact for {0,1}); disable for genuinely soft float targets.
    """
    if loss_mask is not None:
        if fused_nonlin == "softmax":
            x = jax.nn.softmax(x, axis=1)
        elif fused_nonlin == "sigmoid":
            x = jax.nn.sigmoid(x)
        elif apply_nonlin is not None:
            x = apply_nonlin(x)
        return _iou_loss_masked_jax(x, y, loss_mask, batch_dice=batch_dice,
                                    do_bg=do_bg, smooth=smooth, square=square)

    nonlin = None
    if fused_nonlin is not None:
        assert fused_nonlin in ("softmax", "sigmoid")
        nonlin = fused_nonlin
    elif apply_nonlin is not None:
        x = apply_nonlin(x)

    B, C = int(x.shape[0]), int(x.shape[1])
    spatial = tuple(int(s) for s in x.shape[2:])
    hw = int(np.prod(spatial)) if spatial else 1

    x3 = x.reshape(B, C, hw)

    # Shape-based target classification matches nnU-Net's get_tp_fp_fn: a
    # target with the same shape as x is used directly; otherwise it is an
    # integer label map.
    if y.shape == x.shape:
        labels = False
        y3 = y.reshape(B, C, hw)
        if (downcast_onehot_targets
                and jnp.issubdtype(y3.dtype, jnp.floating)
                and y3.dtype.itemsize > 2):
            y3 = y3.astype(jnp.bfloat16)      # exact for hard {0,1} targets
    else:
        labels = True
        y3 = y.reshape(B, 1, hw)
        if y3.dtype not in [jnp.dtype(d) for d in _LABEL_DTYPES]:
            y3 = y3.astype(jnp.int32)         # keep narrow int dtypes as-is

    # Pad the flattened spatial axis to a multiple of 128 so it re-blocks as
    # (rows, 128) = (sublanes, lanes).  Padded elements are masked in-kernel
    # against the true `hw`, so the pad value never matters (and no pad copy
    # happens at all when hw is already 128-aligned).
    hw_p = _round_up(hw, _LANES)
    if hw_p != hw:
        pad = hw_p - hw
        x3 = jnp.pad(x3, ((0, 0), (0, 0), (0, pad)))
        y3 = jnp.pad(y3, ((0, 0), (0, 0), (0, pad)))
    rows = hw_p // _LANES
    x4 = x3.reshape(B, C, rows, _LANES)
    y4 = y3.reshape(B, 1 if labels else C, rows, _LANES)

    s0, s1, s2 = _tp_fp_fn_sums(
        x4, y4, hw=hw, square=square, labels=labels, nonlin=nonlin,
        row_tile=row_tile, hw_splits=hw_splits,
        input_budget_bytes=input_budget_bytes)

    if square:
        tp, fp, fn = s0, s1, s2
    else:
        sx, sy, sxy = s0, s1, s2
        tp = sxy
        fp = sx - sxy
        fn = sy - sxy

    if batch_dice:
        tp, fp, fn = tp.sum(0), fp.sum(0), fn.sum(0)

    iou = (tp + smooth) / (tp + fp + fn + smooth)

    if not do_bg:
        iou = iou[1:] if batch_dice else iou[:, 1:]

    return -iou.mean()


# --------------------------------------------------------------------------- #
# Pure-JAX reference (one-hot targets) and self-test
# --------------------------------------------------------------------------- #
def _iou_loss_ref(x, y, *, batch_dice=False, do_bg=True, smooth=1.0,
                  square=False):
    x = x.astype(jnp.float32)
    y = y.astype(jnp.float32)
    axes = tuple(range(2, x.ndim))
    tp_e = x * y
    fp_e = x * (1.0 - y)
    fn_e = (1.0 - x) * y
    if square:
        tp_e, fp_e, fn_e = tp_e ** 2, fp_e ** 2, fn_e ** 2
    if batch_dice:
        axes = (0,) + axes
    tp, fp, fn = tp_e.sum(axes), fp_e.sum(axes), fn_e.sum(axes)
    iou = (tp + smooth) / (tp + fp + fn + smooth)
    if not do_bg:
        iou = iou[1:] if batch_dice else iou[:, 1:]
    return -iou.mean()


if __name__ == "__main__":
    keys = jax.random.split(jax.random.PRNGKey(0), 10)

    def check(got, want, name, rtol=1e-5, atol=1e-5):
        got = np.asarray(jax.block_until_ready(got))
        want = np.asarray(jax.block_until_ready(want))
        assert np.allclose(got, want, rtol=rtol, atol=atol), (name, got, want)

    # --- Test 1: one-hot float targets, defaults (bf16 target downcast). -----
    B, C, H, W = 2, 4, 16, 16
    logits = jax.random.normal(keys[0], (B, C, H, W), dtype=jnp.float32)
    x = jax.nn.softmax(logits, axis=1)
    lab = jax.random.randint(keys[1], (B, H, W), 0, C)
    y = jax.nn.one_hot(lab, C, axis=1, dtype=jnp.float32)
    check(iou_loss(x, y), _iou_loss_ref(x, y), "onehot-default")

    # --- Test 2: int8 labels (narrow streaming), batch_dice / no-bg. ---------
    check(iou_loss(x, lab[:, None].astype(jnp.int8), batch_dice=True,
                   do_bg=False),
          _iou_loss_ref(x, y, batch_dice=True, do_bg=False), "labels-int8")

    # --- Test 3: square=True with one-hot targets. ----------------------------
    check(iou_loss(x, y, square=True), _iou_loss_ref(x, y, square=True),
          "square")

    # --- Test 4: ragged HW (279 -> padded 384) + fused in-kernel softmax. ----
    B2, C2, H2, W2 = 2, 3, 9, 31
    logits2 = jax.random.normal(keys[2], (B2, C2, H2, W2), dtype=jnp.float32)
    lab2 = jax.random.randint(keys[3], (B2, H2, W2), 0, C2)
    y2 = jax.nn.one_hot(lab2, C2, axis=1, dtype=jnp.float32)
    check(iou_loss(logits2, y2, fused_nonlin="softmax"),
          _iou_loss_ref(jax.nn.softmax(logits2, axis=1), y2),
          "ragged-fused-softmax", rtol=1e-4)

    # --- Test 5: forced small row tile -> HW split over the outer grid axis,
    #     odd block count (one fully-masked clamped block), integer labels. ---
    B3, C3, H3, W3 = 1, 3, 40, 64          # HW = 2560 -> rows = 20
    logits3 = jax.random.normal(keys[4], (B3, C3, H3, W3), dtype=jnp.float32)
    xs = jax.nn.softmax(logits3, axis=1)
    lab3 = jax.random.randint(keys[5], (B3, H3, W3), 0, C3)
    ys = jax.nn.one_hot(lab3, C3, axis=1, dtype=jnp.float32)
    check(iou_loss(xs, lab3, row_tile=8, hw_splits=2),
          _iou_loss_ref(xs, ys), "hw-split-labels")

    # --- Test 6: square=True with hard labels (fast square path) + splits. ---
    check(iou_loss(xs, lab3[:, None], square=True, row_tile=8, hw_splits=2),
          _iou_loss_ref(xs, ys, square=True), "square-labels-split")

    # --- Test 7: default tiling with in-vreg fold (groups > 1) + HW split. ---
    B4, C4, H4, W4 = 1, 2, 64, 64          # HW = 4096 -> rows = 32, tile = 16
    logits4 = jax.random.normal(keys[6], (B4, C4, H4, W4), dtype=jnp.float32)
    xf = jax.nn.softmax(logits4, axis=1)
    lab4 = jax.random.randint(keys[7], (B4, H4, W4), 0, C4)
    yf = jax.nn.one_hot(lab4, C4, axis=1, dtype=jnp.float32)
    check(iou_loss(xf, yf), _iou_loss_ref(xf, yf), "fold-split")

    # --- Test 8: loss_mask fallback path. -------------------------------------
    m = (jax.random.uniform(keys[8], (B, 1, H, W)) > 0.3).astype(jnp.float32)
    tp_m = (x * y * m).sum((2, 3))
    fp_m = (x * (1.0 - y) * m).sum((2, 3))
    fn_m = ((1.0 - x) * y * m).sum((2, 3))
    want_m = -jnp.mean((tp_m + 1.0) / (tp_m + fp_m + fn_m + 1.0))
    check(iou_loss(x, y, loss_mask=m), want_m, "loss-mask-fallback")

    print("KERNEL_OK")
</pallas_src>

<mosaic_0001>
module attributes {stable_mosaic.version = 11 : i64} {
  func.func @_sums_kernel(%arg0: i32, %arg1: i32, %arg2: i32, %arg3: memref<1x4x2x128xf32, #tpu.memory_space<vmem>>, %arg4: memref<1x4x2x128xbf16, #tpu.memory_space<vmem>>, %arg5: memref<1x1x4x2x128xf32, #tpu.memory_space<vmem>>, %arg6: memref<1x1x4x2x128xf32, #tpu.memory_space<vmem>>, %arg7: memref<1x1x4x2x128xf32, #tpu.memory_space<vmem>>) attributes {dimension_semantics = [#tpu.dimension_semantics<parallel>, #tpu.dimension_semantics<parallel>, #tpu.dimension_semantics<arbitrary>], iteration_bounds = array<i64: 2, 1, 1>, scalar_prefetch = 0 : i64, scratch_operands = 0 : i64, tpu.core_type = #tpu.core_type<tc>, window_params = [{transform_indices = @transform_0, window_bounds = array<i64: 1, 4, 2, 128>}, {transform_indices = @transform_1, window_bounds = array<i64: 1, 4, 2, 128>}, {transform_indices = @transform_2, window_bounds = array<i64: 1, 1, 4, 2, 128>}, {transform_indices = @transform_3, window_bounds = array<i64: 1, 1, 4, 2, 128>}, {transform_indices = @transform_4, window_bounds = array<i64: 1, 1, 4, 2, 128>}]} {
    %c0_i32 = arith.constant 0 : i32
    %0 = arith.cmpi eq, %arg2, %c0_i32 : i32
    %1 = arith.extui %0 : i1 to i32
    %c0_i32_0 = arith.constant 0 : i32
    %2 = arith.cmpi ne, %1, %c0_i32_0 : i32
    scf.if %2 {
      %cst = arith.constant 0.000000e+00 : f32
      %27 = vector.broadcast %cst : f32 to vector<4x2x128xf32>
      %c0_38 = arith.constant 0 : index
      %c0_39 = arith.constant 0 : index
      %c0_40 = arith.constant 0 : index
      %c0_41 = arith.constant 0 : index
      %c0_42 = arith.constant 0 : index
      %28 = vector.load %arg5[%c0_38, %c0_39, %c0_40, %c0_41, %c0_42] : memref<1x1x4x2x128xf32, #tpu.memory_space<vmem>>, vector<1x1x4x2x128xf32>
      %29 = vector.shape_cast %28 : vector<1x1x4x2x128xf32> to vector<4x2x128xf32>
      %30 = vector.shape_cast %27 : vector<4x2x128xf32> to vector<1x1x4x2x128xf32>
      tpu.vector_store %arg5[%c0_38, %c0_39, %c0_40, %c0_41, %c0_42], %30 {strides = array<i32>} : memref<1x1x4x2x128xf32, #tpu.memory_space<vmem>>, vector<1x1x4x2x128xf32>,
      %cst_43 = arith.constant 0.000000e+00 : f32
      %31 = vector.broadcast %cst_43 : f32 to vector<4x2x128xf32>
      %c0_44 = arith.constant 0 : index
      %c0_45 = arith.constant 0 : index
      %c0_46 = arith.constant 0 : index
      %c0_47 = arith.constant 0 : index
      %c0_48 = arith.constant 0 : index
      %32 = vector.load %arg6[%c0_44, %c0_45, %c0_46, %c0_47, %c0_48] : memref<1x1x4x2x128xf32, #tpu.memory_space<vmem>>, vector<1x1x4x2x128xf32>
      %33 = vector.shape_cast %32 : vector<1x1x4x2x128xf32> to vector<4x2x128xf32>
      %34 = vector.shape_cast %31 : vector<4x2x128xf32> to vector<1x1x4x2x128xf32>
      tpu.vector_store %arg6[%c0_44, %c0_45, %c0_46, %c0_47, %c0_48], %34 {strides = array<i32>} : memref<1x1x4x2x128xf32, #tpu.memory_space<vmem>>, vector<1x1x4x2x128xf32>,
      %cst_49 = arith.constant 0.000000e+00 : f32
      %35 = vector.broadcast %cst_49 : f32 to vector<4x2x128xf32>
      %c0_50 = arith.constant 0 : index
      %c0_51 = arith.constant 0 : index
      %c0_52 = arith.constant 0 : index
      %c0_53 = arith.constant 0 : index
      %c0_54 = arith.constant 0 : index
      %36 = vector.load %arg7[%c0_50, %c0_51, %c0_52, %c0_53, %c0_54] : memref<1x1x4x2x128xf32, #tpu.memory_space<vmem>>, vector<1x1x4x2x128xf32>
      %37 = vector.shape_cast %36 : vector<1x1x4x2x128xf32> to vector<4x2x128xf32>
      %38 = vector.shape_cast %35 : vector<4x2x128xf32> to vector<1x1x4x2x128xf32>
      tpu.vector_store %arg7[%c0_50, %c0_51, %c0_52, %c0_53, %c0_54], %38 {strides = array<i32>} : memref<1x1x4x2x128xf32, #tpu.memory_space<vmem>>, vector<1x1x4x2x128xf32>,
    } else {
    }
    %c0 = arith.constant 0 : index
    %c0_1 = arith.constant 0 : index
    %c0_2 = arith.constant 0 : index
    %c0_3 = arith.constant 0 : index
    %3 = vector.load %arg3[%c0, %c0_1, %c0_2, %c0_3] : memref<1x4x2x128xf32, #tpu.memory_space<vmem>>, vector<1x4x2x128xf32>
    %4 = vector.shape_cast %3 : vector<1x4x2x128xf32> to vector<4x2x128xf32>
    %c0_4 = arith.constant 0 : index
    %c0_5 = arith.constant 0 : index
    %c0_6 = arith.constant 0 : index
    %c0_7 = arith.constant 0 : index
    %5 = vector.load %arg4[%c0_4, %c0_5, %c0_6, %c0_7] : memref<1x4x2x128xbf16, #tpu.memory_space<vmem>>, vector<1x4x2x128xbf16>
    %6 = vector.shape_cast %5 : vector<1x4x2x128xbf16> to vector<4x2x128xbf16>
    %7 = arith.extf %6 : vector<4x2x128xbf16> to vector<4x2x128xf32>
    %8 = arith.mulf %4, %7 : vector<4x2x128xf32>
    %c0_8 = arith.constant 0 : index
    %c0_9 = arith.constant 0 : index
    %c0_10 = arith.constant 0 : index
    %c0_11 = arith.constant 0 : index
    %c0_12 = arith.constant 0 : index
    %9 = vector.load %arg5[%c0_8, %c0_9, %c0_10, %c0_11, %c0_12] : memref<1x1x4x2x128xf32, #tpu.memory_space<vmem>>, vector<1x1x4x2x128xf32>
    %10 = vector.shape_cast %9 : vector<1x1x4x2x128xf32> to vector<4x2x128xf32>
    %11 = arith.addf %10, %4 : vector<4x2x128xf32>
    %c0_13 = arith.constant 0 : index
    %c0_14 = arith.constant 0 : index
    %c0_15 = arith.constant 0 : index
    %c0_16 = arith.constant 0 : index
    %c0_17 = arith.constant 0 : index
    %12 = vector.load %arg5[%c0_13, %c0_14, %c0_15, %c0_16, %c0_17] : memref<1x1x4x2x128xf32, #tpu.memory_space<vmem>>, vector<1x1x4x2x128xf32>
    %13 = vector.shape_cast %12 : vector<1x1x4x2x128xf32> to vector<4x2x128xf32>
    %14 = vector.shape_cast %11 : vector<4x2x128xf32> to vector<1x1x4x2x128xf32>
    tpu.vector_store %arg5[%c0_13, %c0_14, %c0_15, %c0_16, %c0_17], %14 {strides = array<i32>} : memref<1x1x4x2x128xf32, #tpu.memory_space<vmem>>, vector<1x1x4x2x128xf32>,
    %c0_18 = arith.constant 0 : index
    %c0_19 = arith.constant 0 : index
    %c0_20 = arith.constant 0 : index
    %c0_21 = arith.constant 0 : index
    %c0_22 = arith.constant 0 : index
    %15 = vector.load %arg6[%c0_18, %c0_19, %c0_20, %c0_21, %c0_22] : memref<1x1x4x2x128xf32, #tpu.memory_space<vmem>>, vector<1x1x4x2x128xf32>
    %16 = vector.shape_cast %15 : vector<1x1x4x2x128xf32> to vector<4x2x128xf32>
    %17 = arith.addf %16, %7 : vector<4x2x128xf32>
    %c0_23 = arith.constant 0 : index
    %c0_24 = arith.constant 0 : index
    %c0_25 = arith.constant 0 : index
    %c0_26 = arith.constant 0 : index
    %c0_27 = arith.constant 0 : index
    %18 = vector.load %arg6[%c0_23, %c0_24, %c0_25, %c0_26, %c0_27] : memref<1x1x4x2x128xf32, #tpu.memory_space<vmem>>, vector<1x1x4x2x128xf32>
    %19 = vector.shape_cast %18 : vector<1x1x4x2x128xf32> to vector<4x2x128xf32>
    %20 = vector.shape_cast %17 : vector<4x2x128xf32> to vector<1x1x4x2x128xf32>
    tpu.vector_store %arg6[%c0_23, %c0_24, %c0_25, %c0_26, %c0_27], %20 {strides = array<i32>} : memref<1x1x4x2x128xf32, #tpu.memory_space<vmem>>, vector<1x1x4x2x128xf32>,
    %c0_28 = arith.constant 0 : index
    %c0_29 = arith.constant 0 : index
    %c0_30 = arith.constant 0 : index
    %c0_31 = arith.constant 0 : index
    %c0_32 = arith.constant 0 : index
    %21 = vector.load %arg7[%c0_28, %c0_29, %c0_30, %c0_31, %c0_32] : memref<1x1x4x2x128xf32, #tpu.memory_space<vmem>>, vector<1x1x4x2x128xf32>
    %22 = vector.shape_cast %21 : vector<1x1x4x2x128xf32> to vector<4x2x128xf32>
    %23 = arith.addf %22, %8 : vector<4x2x128xf32>
    %c0_33 = arith.constant 0 : index
    %c0_34 = arith.constant 0 : index
    %c0_35 = arith.constant 0 : index
    %c0_36 = arith.constant 0 : index
    %c0_37 = arith.constant 0 : index
    %24 = vector.load %arg7[%c0_33, %c0_34, %c0_35, %c0_36, %c0_37] : memref<1x1x4x2x128xf32, #tpu.memory_space<vmem>>, vector<1x1x4x2x128xf32>
    %25 = vector.shape_cast %24 : vector<1x1x4x2x128xf32> to vector<4x2x128xf32>
    %26 = vector.shape_cast %23 : vector<4x2x128xf32> to vector<1x1x4x2x128xf32>
    tpu.vector_store %arg7[%c0_33, %c0_34, %c0_35, %c0_36, %c0_37], %26 {strides = array<i32>} : memref<1x1x4x2x128xf32, #tpu.memory_space<vmem>>, vector<1x1x4x2x128xf32>,
    return
  }
  func.func @transform_0(%arg0: i32, %arg1: i32, %arg2: i32) -> (i32, i32, i32, i32) {
    %c1_i32 = arith.constant 1 : i32
    %0 = arith.muli %arg1, %c1_i32 : i32
    %1 = arith.addi %0, %arg2 : i32
    %c0_i32 = arith.constant 0 : i32
    %c0_i32_0 = arith.constant 0 : i32
    %c0_i32_1 = arith.constant 0 : i32
    return %arg0, %c0_i32, %1, %c0_i32_0 : i32, i32, i32, i32
  }
  func.func @transform_1(%arg0: i32, %arg1: i32, %arg2: i32) -> (i32, i32, i32, i32) {
    %c1_i32 = arith.constant 1 : i32
    %0 = arith.muli %arg1, %c1_i32 : i32
    %1 = arith.addi %0, %arg2 : i32
    %c0_i32 = arith.constant 0 : i32
    %c0_i32_0 = arith.constant 0 : i32
    %c0_i32_1 = arith.constant 0 : i32
    return %arg0, %c0_i32, %1, %c0_i32_0 : i32, i32, i32, i32
  }
  func.func @transform_2(%arg0: i32, %arg1: i32, %arg2: i32) -> (i32, i32, i32, i32, i32) {
    %c0_i32 = arith.constant 0 : i32
    %c0_i32_0 = arith.constant 0 : i32
    %c0_i32_1 = arith.constant 0 : i32
    %c0_i32_2 = arith.constant 0 : i32
    return %arg0, %arg1, %c0_i32, %c0_i32_0, %c0_i32_1 : i32, i32, i32, i32, i32
  }
  func.func @transform_3(%arg0: i32, %arg1: i32, %arg2: i32) -> (i32, i32, i32, i32, i32) {
    %c0_i32 = arith.constant 0 : i32
    %c0_i32_0 = arith.constant 0 : i32
    %c0_i32_1 = arith.constant 0 : i32
    %c0_i32_2 = arith.constant 0 : i32
    return %arg0, %arg1, %c0_i32, %c0_i32_0, %c0_i32_1 : i32, i32, i32, i32, i32
  }
  func.func @transform_4(%arg0: i32, %arg1: i32, %arg2: i32) -> (i32, i32, i32, i32, i32) {
    %c0_i32 = arith.constant 0 : i32
    %c0_i32_0 = arith.constant 0 : i32
    %c0_i32_1 = arith.constant 0 : i32
    %c0_i32_2 = arith.constant 0 : i32
    return %arg0, %arg1, %c0_i32, %c0_i32_0, %c0_i32_1 : i32, i32, i32, i32, i32
  }
}

</mosaic_0001>

<llo_original>
// kernel: tpu_custom_call.1
$region0: #{tpu_custom_call.1}
  #allocation0 [shape = 'u32[]', space=smem, size = 0x4, offset = 0x4, fixed_abs, tag = 'smem constant byte address 0x4 - core index']
  #allocation1 [shape = 'u32[144,128]{1,0:T(1,128)}', space=vmem, size = 0x12000, scoped, tag = 'internal scratch']
  %s0 = inlined_call_operand.hbm [shape: f32[2,4,2,128], index: 0, kind: input, shape index: {}]
  %s1 = inlined_call_operand.hbm [shape: bf16[2,4,2,128], index: 1, kind: input, shape index: {}]
  %s2 = inlined_call_operand.hbm [shape: f32[2,1,4,2,128], index: 2, kind: output, shape index: {0}]
  %s3 = inlined_call_operand.hbm [shape: f32[2,1,4,2,128], index: 3, kind: output, shape index: {1}]
  %s4 = inlined_call_operand.hbm [shape: f32[2,1,4,2,128], index: 4, kind: output, shape index: {2}]
  %5 = xla_tuple %s2, %s3, %s4
  %s6 = sld [smem:[#allocation0]]
  $region69: #{tpu_custom_call.1} parent=0
    _
  %s8 = ssub.s32 1, %s6
  %s9 = scalar_select 0, %s8, %s6
  $region1: #{tpu_custom_call.1} parent=0
    #allocation2 [shape = 'u8[8192]{0}', space=vmem, size = 0x2000, scoped, tag = 'input window, operand 0']
    #allocation3 [shape = 's32[2]{0}', space=sflag, size = 0x8, scoped, tag = 'scoped memory for tpu_custom_call.1']
    #allocation4 [shape = 's32[2]{0}', space=sflag, size = 0x8, scoped, tag = 'scoped memory for tpu_custom_call.1']
    #allocation5 [shape = 'u8[4096]{0}', space=vmem, size = 0x1000, scoped, tag = 'input window, operand 1']
    #allocation6 [shape = 's32[2]{0}', space=sflag, size = 0x8, scoped, tag = 'scoped memory for tpu_custom_call.1']
    #allocation7 [shape = 'u8[8192]{0}', space=vmem, size = 0x2000, scoped, tag = 'output window, operand 0']
    #allocation8 [shape = 'u8[8192]{0}', space=vmem, size = 0x2000, scoped, tag = 'output window, operand 1']
    #allocation9 [shape = 's32[2]{0}', space=sflag, size = 0x8, scoped, tag = 'scoped memory for tpu_custom_call.1']
    #allocation10 [shape = 'u8[8192]{0}', space=vmem, size = 0x2000, scoped, tag = 'output window, operand 2']
    %10 = vsyncpa [#allocation3], 0
    %s11 = scalar_lea.sflag [#allocation3], 1
    %12 = vsyncpa %s11, 0
    %13 = vsyncpa [#allocation6], 0
    %s14 = scalar_lea.sflag [#allocation6], 1
    %15 = vsyncpa %s14, 0
    %16 = vsyncpa [#allocation4], 0
    %s17 = scalar_lea.sflag [#allocation4], 1
    %18 = vsyncpa %s17, 0
    %19 = vsyncpa [#allocation9], 0
    %s20 = scalar_lea.sflag [#allocation9], 1
    %21 = vsyncpa %s20, 0
    loop: start=0, step=1, limit=4
    $region2: #{tpu_custom_call.1} parent=1 // loop_pre_header
      _
    $region3: #{tpu_custom_call.1} parent=1 // loop_header
      %s23 = sphi 0, %s27
      %p24 = scmp.ge.s32.totalorder %s23, 4
      %s30 = sphi 0, %s49
      %s31 = sphi 0, %s45
      %s32 = sphi 0, %s41
      %s33 = sphi 0, %s30
      %s34 = sphi 0, %s31
      %s35 = sphi 0, %s32
      %s36 = sphi 0, %s33
      %s37 = sphi 0, %s34
      %s38 = sphi 0, %s35
      %s56 = sphi 0, %s58
      %s59 = sphi 0, %s56
      %s60 = sphi 0, %s59
      %s76 = sphi 0, %s60
      %s86 = sphi 0, %s88
      %s89 = sphi 0, %s86
      %s90 = sphi 0, %s89
      %s106 = sphi 0, %s90
      %s114 = sphi 0, %s116
      %s117 = sphi 0, %s114
      %s118 = sphi 0, %s117
      %s134 = sphi 0, %s118
      %s142 = sphi 0, %s144
      %s145 = sphi 0, %s142
      %s146 = sphi 0, %s145
      %s162 = sphi 0, %s146
      %s170 = sphi 0, %s172
      %s173 = sphi 0, %s170
      %s174 = sphi 0, %s173
      %s190 = sphi 0, %s174
    $region4: #{tpu_custom_call.1} parent=1 // loop_header_branch
      %26 = sbr.rel (%p24) target = $region8
    $region5: #{tpu_custom_call.1} parent=1 // loop_body
      %s28 = ssub.s32 %s23, 1
      %s29 = ssub.s32 %s23, 2
      %s39 = sadd.s32 1, %s32
      %p40 = scmp.ge.s32.totalorder %s39, 1
      %s41 = scalar_select %p40, 0, %s39
      %s42 = sadd.s32 1, %s31
      %s43 = scalar_select %p40, %s42, %s31
      %p44 = scmp.ge.s32.totalorder %s43, 1
      %s45 = scalar_select %p44, 0, %s43
      %s46 = sadd.s32 1, %s30
      %s47 = scalar_select %p44, %s46, %s30
      %p48 = scmp.ge.s32.totalorder %s47, 2
      %s49 = scalar_select %p48, 0, %s47
      %s50 = sadd.s32 %s31, %s32
      %s51 = sadd.s32 %s45, %s41
      %s52 = ssub.s32 %s30, %s49
      %s53 = ssub.s32 %s50, %s51
      %s54 = sor.u32 %s52, %s53
      %p55 = scmp.eq.s32.totalorder %s54, 0
      %s57 = sadd.s32 %s56, 1
      %s58 = scalar_select %p55, %s56, %s57
      %p61 = pneg %p55
      %p62 = scmp.eq.s32.totalorder %s23, 1
      %p63 = por %p61, %p62
      %p64 = scmp.ne.s32.totalorder %s56, %s59
      %p65 = scmp.eq.s32.totalorder %s23, 0
      %p66 = por %p64, %p65
      %p67 = scmp.ne.s32.totalorder %s56, %s59
      %p68 = scmp.eq.s32.totalorder %s28, 1
      %p69 = por %p67, %p68
      %p70 = scmp.ne.s32.totalorder %s59, %s60
      %p71 = scmp.eq.s32.totalorder %s28, 0
      %p72 = por %p70, %p71
      %p73 = scmp.ne.s32.totalorder %s59, %s60
      %p74 = scmp.eq.s32.totalorder %s29, 1
      %p75 = por %p73, %p74
      %p77 = scmp.ne.s32.totalorder %s60, %s76
      %p78 = scmp.eq.s32.totalorder %s29, 0
      %p79 = por %p77, %p78
      %s80 = sadd.s32 %s31, %s32
      %s81 = sadd.s32 %s45, %s41
      %s82 = ssub.s32 %s30, %s49
      %s83 = ssub.s32 %s80, %s81
      %s84 = sor.u32 %s82, %s83
      %p85 = scmp.eq.s32.totalorder %s84, 0
      %s87 = sadd.s32 %s86, 1
      %s88 = scalar_select %p85, %s86, %s87
      %p91 = pneg %p85
      %p92 = scmp.eq.s32.totalorder %s23, 1
      %p93 = por %p91, %p92
      %p94 = scmp.ne.s32.totalorder %s86, %s89
      %p95 = scmp.eq.s32.totalorder %s23, 0
      %p96 = por %p94, %p95
      %p97 = scmp.ne.s32.totalorder %s86, %s89
      %p98 = scmp.eq.s32.totalorder %s28, 1
      %p99 = por %p97, %p98
      %p100 = scmp.ne.s32.totalorder %s89, %s90
      %p101 = scmp.eq.s32.totalorder %s28, 0
      %p102 = por %p100, %p101
      %p103 = scmp.ne.s32.totalorder %s89, %s90
      %p104 = scmp.eq.s32.totalorder %s29, 1
      %p105 = por %p103, %p104
      %p107 = scmp.ne.s32.totalorder %s90, %s106
      %p108 = scmp.eq.s32.totalorder %s29, 0
      %p109 = por %p107, %p108
      %s110 = ssub.s32 %s30, %s49
      %s111 = ssub.s32 %s31, %s45
      %s112 = sor.u32 %s110, %s111
      %p113 = scmp.eq.s32.totalorder %s112, 0
      %s115 = sadd.s32 %s114, 1
      %s116 = scalar_select %p113, %s114, %s115
      %p119 = pneg %p113
      %p120 = scmp.eq.s32.totalorder %s23, 1
      %p121 = por %p119, %p120
      %p122 = scmp.ne.s32.totalorder %s114, %s117
      %p123 = scmp.eq.s32.totalorder %s23, 0
      %p124 = por %p122, %p123
      %p125 = scmp.ne.s32.totalorder %s114, %s117
      %p126 = scmp.eq.s32.totalorder %s28, 1
      %p127 = por %p125, %p126
      %p128 = scmp.ne.s32.totalorder %s117, %s118
      %p129 = scmp.eq.s32.totalorder %s28, 0
      %p130 = por %p128, %p129
      %p131 = scmp.ne.s32.totalorder %s117, %s118
      %p132 = scmp.eq.s32.totalorder %s29, 1
      %p133 = por %p131, %p132
      %p135 = scmp.ne.s32.totalorder %s118, %s134
      %p136 = scmp.eq.s32.totalorder %s29, 0
      %p137 = por %p135, %p136
      %s138 = ssub.s32 %s30, %s49
      %s139 = ssub.s32 %s31, %s45
      %s140 = sor.u32 %s138, %s139
      %p141 = scmp.eq.s32.totalorder %s140, 0
      %s143 = sadd.s32 %s142, 1
      %s144 = scalar_select %p141, %s142, %s143
      %p147 = pneg %p141
      %p148 = scmp.eq.s32.totalorder %s23, 1
      %p149 = por %p147, %p148
      %p150 = scmp.ne.s32.totalorder %s142, %s145
      %p151 = scmp.eq.s32.totalorder %s23, 0
      %p152 = por %p150, %p151
      %p153 = scmp.ne.s32.totalorder %s142, %s145
      %p154 = scmp.eq.s32.totalorder %s28, 1
      %p155 = por %p153, %p154
      %p156 = scmp.ne.s32.totalorder %s145, %s146
      %p157 = scmp.eq.s32.totalorder %s28, 0
      %p158 = por %p156, %p157
      %p159 = scmp.ne.s32.totalorder %s145, %s146
      %p160 = scmp.eq.s32.totalorder %s29, 1
      %p161 = por %p159, %p160
      %p163 = scmp.ne.s32.totalorder %s146, %s162
      %p164 = scmp.eq.s32.totalorder %s29, 0
      %p165 = por %p163, %p164
      %s166 = ssub.s32 %s30, %s49
      %s167 = ssub.s32 %s31, %s45
      %s168 = sor.u32 %s166, %s167
      %p169 = scmp.eq.s32.totalorder %s168, 0
      %s171 = sadd.s32 %s170, 1
      %s172 = scalar_select %p169, %s170, %s171
      %p175 = pneg %p169
      %p176 = scmp.eq.s32.totalorder %s23, 1
      %p177 = por %p175, %p176
      %p178 = scmp.ne.s32.totalorder %s170, %s173
      %p179 = scmp.eq.s32.totalorder %s23, 0
      %p180 = por %p178, %p179
      %p181 = scmp.ne.s32.totalorder %s170, %s173
      %p182 = scmp.eq.s32.totalorder %s28, 1
      %p183 = por %p181, %p182
      %p184 = scmp.ne.s32.totalorder %s173, %s174
      %p185 = scmp.eq.s32.totalorder %s28, 0
      %p186 = por %p184, %p185
      %p187 = scmp.ne.s32.totalorder %s173, %s174
      %p188 = scmp.eq.s32.totalorder %s29, 1
      %p189 = por %p187, %p188
      %p191 = scmp.ne.s32.totalorder %s174, %s190
      %p192 = scmp.eq.s32.totalorder %s29, 0
      %p193 = por %p191, %p192
      %p194 = scmp.le.s32.totalorder 1, %s23
      %p195 = scmp.lt.s32.totalorder %s23, 3
      %p196 = pnand %p194, %p195
      %p197 = pneg %p196
      // Predicated region
      $region9: #{tpu_custom_call.1} parent=5 // pred_check
        _
      $region10: #{tpu_custom_call.1} parent=5 // pred_check_branch
        %199 = sbr.rel (%p196) target = $region12
      $region11: #{tpu_custom_call.1} parent=5 // pred_region
        %s200 = ssub.s32 %s23, 1
      $region12: #{tpu_custom_call.1} parent=5 // pred_fallthru
        _
      %p201 = scmp.lt.s32.totalorder %s23, 2
      // Predicated region
      $region13: #{tpu_custom_call.1} parent=5 // pred_check
        %p202 = pneg %p201
      $region14: #{tpu_custom_call.1} parent=5 // pred_check_branch
        %204 = sbr.rel (%p202) target = $region16
      $region15: #{tpu_custom_call.1} parent=5 // pred_region
        // Predicated region
        $region17: #{tpu_custom_call.1} parent=15 // pred_check
          %p205 = pneg %p66
        $region18: #{tpu_custom_call.1} parent=15 // pred_check_branch
          %207 = sbr.rel (%p205) target = $region20
        $region19: #{tpu_custom_call.1} parent=15 // pred_region
          %s208 = sand.u32 %s56, 1
          %s209 = scalar_lea.sflag [#allocation3], %s208
          %s210 = sand.u32 %s56, 1
          %s211 = smul.addr %s210, 8
          %s212 = scalar_lea.vmem [#allocation2], %s211
          %s213 = sadd.s32 %s31, %s32
          %s215 = ssub.s32 128, 128
          %216 = vsyncadd %s209, %s215
          %s217 = smul.addr %s30, 4
          %s218 = sadd.s32 %s213, %s217
          %s219 = smul.addr %s218, 32
          %s220 = scalar_lea.hbm %s0, %s219
          %s221 = sshll.u32 %s212, 4
          %s222 = int_to_ptr.vmem [resolvable:$true] %s221
          %227 = dma.hbm_to_vmem [thread:$0]  %s220, 128, %s222, %s209, 32, 32, 2
        $region20: #{tpu_custom_call.1} parent=15 // pred_fallthru
          _
        // Predicated region
        $region21: #{tpu_custom_call.1} parent=15 // pred_check
          %p228 = pneg %p96
        $region22: #{tpu_custom_call.1} parent=15 // pred_check_branch
          %230 = sbr.rel (%p228) target = $region24
        $region23: #{tpu_custom_call.1} parent=15 // pred_region
          %s231 = sand.u32 %s86, 1
          %s232 = scalar_lea.sflag [#allocation6], %s231
          %s233 = sand.u32 %s86, 1
          %s234 = smul.addr %s233, 4
          %s235 = scalar_lea.vmem [#allocation5], %s234
          %s236 = sadd.s32 %s31, %s32
          %s238 = ssub.s32 64, 64
          %239 = vsyncadd %s232, %s238
          %s240 = smul.addr %s30, 4
          %s241 = sadd.s32 %s236, %s240
          %s242 = smul.addr %s241, 16
          %s243 = scalar_lea.hbm %s1, %s242
          %s244 = sshll.u32 %s235, 4
          %s245 = int_to_ptr.vmem [resolvable:$true] %s244
          %250 = dma.hbm_to_vmem [thread:$0]  %s243, 64, %s245, %s232, 16, 16, 1
        $region24: #{tpu_custom_call.1} parent=15 // pred_fallthru
          _
      $region16: #{tpu_custom_call.1} parent=5 // pred_fallthru
        _
      %p251 = scmp.le.s32.totalorder 1, %s23
      %p252 = scmp.lt.s32.totalorder %s23, 3
      %p253 = pnand %p251, %p252
      %p254 = pneg %p253
      // Predicated region
      $region25: #{tpu_custom_call.1} parent=5 // pred_check
        _
      $region26: #{tpu_custom_call.1} parent=5 // pred_check_branch
        %256 = sbr.rel (%p253) target = $region28
      $region27: #{tpu_custom_call.1} parent=5 // pred_region
        %s257 = ssub.s32 %s23, 1
        %s258 = sand.u32 %s59, 1
        %s259 = scalar_lea.sflag [#allocation3], %s258
        %s260 = sand.u32 %s59, 1
        %s261 = smul.addr %s260, 8
        %s262 = scalar_lea.vmem [#allocation2], %s261
        // Predicated region
        $region29: #{tpu_custom_call.1} parent=27 // pred_check
          %p263 = pneg %p72
        $region30: #{tpu_custom_call.1} parent=27 // pred_check_branch
          %265 = sbr.rel (%p263) target = $region32
        $region31: #{tpu_custom_call.1} parent=27 // pred_region
          %266 = dma.done %s259, 128
        $region32: #{tpu_custom_call.1} parent=27 // pred_fallthru
          _
        %s267 = sand.u32 %s89, 1
        %s268 = scalar_lea.sflag [#allocation6], %s267
        %s269 = sand.u32 %s89, 1
        %s270 = smul.addr %s269, 4
        %s271 = scalar_lea.vmem [#allocation5], %s270
        // Predicated region
        $region33: #{tpu_custom_call.1} parent=27 // pred_check
          %p272 = pneg %p102
        $region34: #{tpu_custom_call.1} parent=27 // pred_check_branch
          %274 = sbr.rel (%p272) target = $region36
        $region35: #{tpu_custom_call.1} parent=27 // pred_region
          %275 = dma.done %s268, 64
        $region36: #{tpu_custom_call.1} parent=27 // pred_fallthru
          _
        %s276 = sand.u32 %s59, 1
        %s277 = scalar_lea.sflag [#allocation3], %s276
        %s278 = sand.u32 %s59, 1
        %s279 = smul.addr %s278, 8
        %s280 = scalar_lea.vmem [#allocation2], %s279
        %p281 = pneg %p72
        %p282 = pneg %p69
        %s283 = sand.u32 %s89, 1
        %s284 = scalar_lea.sflag [#allocation6], %s283
        %s285 = sand.u32 %s89, 1
        %s286 = smul.addr %s285, 4
        %s287 = scalar_lea.vmem [#allocation5], %s286
        %p288 = pneg %p102
        %p289 = pneg %p99
        %p290 = pneg %p130
        %p291 = pneg %p127
        %s292 = sand.u32 %s117, 1
        %s293 = scalar_lea.sflag [#allocation4], %s292
        %s294 = sand.u32 %s117, 1
        %s295 = smul.addr %s294, 8
        %s296 = scalar_lea.vmem [#allocation7], %s295
        %p297 = pneg %p158
        %p298 = pneg %p155
        %s299 = sand.u32 %s28, 1
        %s300 = scalar_lea.sflag [#allocation9], %s299
        %s301 = sand.u32 %s145, 1
        %s302 = smul.addr %s301, 8
        %s303 = scalar_lea.vmem [#allocation8], %s302
        %p304 = pneg %p186
        %p305 = pneg %p183
        %s306 = sand.u32 %s28, 1
        %s307 = scalar_lea.sflag [#allocation9], %s306
        %s308 = sand.u32 %s173, 1
        %s309 = smul.addr %s308, 8
        %s310 = scalar_lea.vmem [#allocation10], %s309
        %s311 = sadd.s32 %s34, %s35
        %s312 = sadd.s32 %s34, %s35
        %p313 = scmp.eq.s32.totalorder %s35, 0
        // Predicated region
        $region37: #{tpu_custom_call.1} parent=27 // pred_check
          %p314 = pneg %p313
        $region38: #{tpu_custom_call.1} parent=27 // pred_check_branch
          %316 = sbr.rel (%p314) target = $region40
        $region39: #{tpu_custom_call.1} parent=27 // pred_region
          %317 = vst [vmem:[%s296] sm:$0x3] 0.0
          %318 = vst [vmem:[%s296 + $0x2] sm:$0x3] 0.0
          %319 = vst [vmem:[%s296 + $0x4] sm:$0x3] 0.0
          %320 = vst [vmem:[%s296 + $0x6] sm:$0x3] 0.0
          %321 = vst [vmem:[%s303] sm:$0x3] 0.0
          %322 = vst [vmem:[%s303 + $0x2] sm:$0x3] 0.0
          %323 = vst [vmem:[%s303 + $0x4] sm:$0x3] 0.0
          %324 = vst [vmem:[%s303 + $0x6] sm:$0x3] 0.0
          %325 = vst [vmem:[%s310] sm:$0x3] 0.0
          %326 = vst [vmem:[%s310 + $0x2] sm:$0x3] 0.0
          %327 = vst [vmem:[%s310 + $0x4] sm:$0x3] 0.0
          %328 = vst [vmem:[%s310 + $0x6] sm:$0x3] 0.0
        $region40: #{tpu_custom_call.1} parent=27 // pred_fallthru
          _
        %v329 = vld [vmem:[%s262] sm:$0x3]
        %v330 = vld [vmem:[%s262 + $0x2] sm:$0x3]
        %v331 = vld [vmem:[%s262 + $0x4] sm:$0x3]
        %v332 = vld [vmem:[%s262 + $0x6] sm:$0x3]
        %v333 = vld [vmem:[%s271] sm:$0x1]
        %v334 = vld [vmem:[%s271 + $0x1] sm:$0x1]
        %v335 = vld [vmem:[%s271 + $0x2] sm:$0x1]
        %v336 = vld [vmem:[%s271 + $0x3] sm:$0x1]
        %v337 = vunpack.c.l.bf16 %v333
        %v338 = vunpack.c.l.bf16 %v334
        %v339 = vunpack.c.l.bf16 %v335
        %v340 = vunpack.c.l.bf16 %v336
        %v341 = vmul.f32 %v329, %v337
        %v342 = vmul.f32 %v330, %v338
        %v343 = vmul.f32 %v331, %v339
        %v344 = vmul.f32 %v332, %v340
        %v345 = vld [vmem:[%s296] sm:$0x3]
        %v346 = vld [vmem:[%s296 + $0x2] sm:$0x3]
        %v347 = vld [vmem:[%s296 + $0x4] sm:$0x3]
        %v348 = vld [vmem:[%s296 + $0x6] sm:$0x3]
        %v349 = vadd.f32 %v345, %v329
        %v350 = vadd.f32 %v346, %v330
        %v351 = vadd.f32 %v347, %v331
        %v352 = vadd.f32 %v348, %v332
        %353 = vst [vmem:[%s296] sm:$0x3] %v349
        %354 = vst [vmem:[%s296 + $0x2] sm:$0x3] %v350
        %355 = vst [vmem:[%s296 + $0x4] sm:$0x3] %v351
        %356 = vst [vmem:[%s296 + $0x6] sm:$0x3] %v352
        %v357 = vld [vmem:[%s303] sm:$0x3]
        %v358 = vld [vmem:[%s303 + $0x2] sm:$0x3]
        %v359 = vld [vmem:[%s303 + $0x4] sm:$0x3]
        %v360 = vld [vmem:[%s303 + $0x6] sm:$0x3]
        %v361 = vadd.f32 %v357, %v337
        %v362 = vadd.f32 %v358, %v338
        %v363 = vadd.f32 %v359, %v339
        %v364 = vadd.f32 %v360, %v340
        %365 = vst [vmem:[%s303] sm:$0x3] %v361
        %366 = vst [vmem:[%s303 + $0x2] sm:$0x3] %v362
        %367 = vst [vmem:[%s303 + $0x4] sm:$0x3] %v363
        %368 = vst [vmem:[%s303 + $0x6] sm:$0x3] %v364
        %v369 = vld [vmem:[%s310] sm:$0x3]
        %v370 = vld [vmem:[%s310 + $0x2] sm:$0x3]
        %v371 = vld [vmem:[%s310 + $0x4] sm:$0x3]
        %v372 = vld [vmem:[%s310 + $0x6] sm:$0x3]
        %v373 = vadd.f32 %v369, %v341
        %v374 = vadd.f32 %v370, %v342
        %v375 = vadd.f32 %v371, %v343
        %v376 = vadd.f32 %v372, %v344
        %377 = vst [vmem:[%s310] sm:$0x3] %v373
        %378 = vst [vmem:[%s310 + $0x2] sm:$0x3] %v374
        %379 = vst [vmem:[%s310 + $0x4] sm:$0x3] %v375
        %380 = vst [vmem:[%s310 + $0x6] sm:$0x3] %v376
        %s381 = sand.u32 %s117, 1
        %s382 = scalar_lea.sflag [#allocation4], %s381
        %s383 = sand.u32 %s117, 1
        %s384 = smul.addr %s383, 8
        %s385 = scalar_lea.vmem [#allocation7], %s384
        %s386 = sand.u32 %s28, 1
        %s387 = scalar_lea.sflag [#allocation9], %s386
        %s388 = sand.u32 %s145, 1
        %s389 = smul.addr %s388, 8
        %s390 = scalar_lea.vmem [#allocation8], %s389
        %s391 = sand.u32 %s28, 1
        %s392 = scalar_lea.sflag [#allocation9], %s391
        %s393 = sand.u32 %s173, 1
        %s394 = smul.addr %s393, 8
        %s395 = scalar_lea.vmem [#allocation10], %s394
        // Predicated region
        $region41: #{tpu_custom_call.1} parent=27 // pred_check
          %p396 = pneg %p127
        $region42: #{tpu_custom_call.1} parent=27 // pred_check_branch
          %398 = sbr.rel (%p396) target = $region44
        $region43: #{tpu_custom_call.1} parent=27 // pred_region
          %s400 = ssub.s32 128, 128
          %401 = vsyncadd %s382, %s400
          %s402 = smul.addr %s34, 4
          %s403 = smul.addr %s33, 4
          %s404 = sadd.s32 %s402, %s403
          %s405 = smul.addr %s404, 32
          %s406 = scalar_lea.hbm %s2, %s405
          %s407 = sshll.u32 %s385, 4
          %s408 = int_to_ptr.vmem [resolvable:$true] %s407
          %413 = dma.vmem_to_hbm [thread:$0]  %s408, 128, %s406, %s382, 32, 32, 2
        $region44: #{tpu_custom_call.1} parent=27 // pred_fallthru
          _
        // Predicated region
        $region45: #{tpu_custom_call.1} parent=27 // pred_check
          %p414 = pneg %p155
        $region46: #{tpu_custom_call.1} parent=27 // pred_check_branch
          %416 = sbr.rel (%p414) target = $region48
        $region47: #{tpu_custom_call.1} parent=27 // pred_region
          %s418 = ssub.s32 128, 128
          %419 = vsyncadd %s387, %s418
          %s420 = smul.addr %s34, 4
          %s421 = smul.addr %s33, 4
          %s422 = sadd.s32 %s420, %s421
          %s423 = smul.addr %s422, 32
          %s424 = scalar_lea.hbm %s3, %s423
          %s425 = sshll.u32 %s390, 4
          %s426 = int_to_ptr.vmem [resolvable:$true] %s425
          %431 = dma.vmem_to_hbm [thread:$0]  %s426, 128, %s424, %s387, 32, 32, 2
        $region48: #{tpu_custom_call.1} parent=27 // pred_fallthru
          _
        // Predicated region
        $region49: #{tpu_custom_call.1} parent=27 // pred_check
          %p432 = pneg %p183
        $region50: #{tpu_custom_call.1} parent=27 // pred_check_branch
          %434 = sbr.rel (%p432) target = $region52
        $region51: #{tpu_custom_call.1} parent=27 // pred_region
          %s436 = ssub.s32 128, 128
          %437 = vsyncadd %s392, %s436
          %s438 = smul.addr %s34, 4
          %s439 = smul.addr %s33, 4
          %s440 = sadd.s32 %s438, %s439
          %s441 = smul.addr %s440, 32
          %s442 = scalar_lea.hbm %s4, %s441
          %s443 = sshll.u32 %s395, 4
          %s444 = int_to_ptr.vmem [resolvable:$true] %s443
          %449 = dma.vmem_to_hbm [thread:$0]  %s444, 128, %s442, %s392, 32, 32, 2
        $region52: #{tpu_custom_call.1} parent=27 // pred_fallthru
          _
      $region28: #{tpu_custom_call.1} parent=5 // pred_fallthru
        _
      %p450 = scmp.le.s32.totalorder 2, %s23
      // Predicated region
      $region53: #{tpu_custom_call.1} parent=5 // pred_check
        %p451 = pneg %p450
      $region54: #{tpu_custom_call.1} parent=5 // pred_check_branch
        %453 = sbr.rel (%p451) target = $region56
      $region55: #{tpu_custom_call.1} parent=5 // pred_region
        %s454 = ssub.s32 %s23, 2
        // Predicated region
        $region57: #{tpu_custom_call.1} parent=55 // pred_check
          %p455 = pneg %p133
        $region58: #{tpu_custom_call.1} parent=55 // pred_check_branch
          %457 = sbr.rel (%p455) target = $region60
        $region59: #{tpu_custom_call.1} parent=55 // pred_region
          %s458 = sand.u32 %s118, 1
          %s459 = scalar_lea.sflag [#allocation4], %s458
          %s460 = sand.u32 %s118, 1
          %s461 = smul.addr %s460, 8
          %s462 = scalar_lea.vmem [#allocation7], %s461
          %463 = dma.done %s459, 128
        $region60: #{tpu_custom_call.1} parent=55 // pred_fallthru
          _
        // Predicated region
        $region61: #{tpu_custom_call.1} parent=55 // pred_check
          %p464 = pneg %p161
        $region62: #{tpu_custom_call.1} parent=55 // pred_check_branch
          %466 = sbr.rel (%p464) target = $region64
        $region63: #{tpu_custom_call.1} parent=55 // pred_region
          %s467 = sand.u32 %s29, 1
          %s468 = scalar_lea.sflag [#allocation9], %s467
          %s469 = sand.u32 %s146, 1
          %s470 = smul.addr %s469, 8
          %s471 = scalar_lea.vmem [#allocation8], %s470
          %472 = dma.done %s468, 128
        $region64: #{tpu_custom_call.1} parent=55 // pred_fallthru
          _
        // Predicated region
        $region65: #{tpu_custom_call.1} parent=55 // pred_check
          %p473 = pneg %p189
        $region66: #{tpu_custom_call.1} parent=55 // pred_check_branch
          %475 = sbr.rel (%p473) target = $region68
        $region67: #{tpu_custom_call.1} parent=55 // pred_region
          %s476 = sand.u32 %s29, 1
          %s477 = scalar_lea.sflag [#allocation9], %s476
          %s478 = sand.u32 %s174, 1
          %s479 = smul.addr %s478, 8
          %s480 = scalar_lea.vmem [#allocation10], %s479
          %481 = dma.done %s477, 128
        $region68: #{tpu_custom_call.1} parent=55 // pred_fallthru
          _
      $region56: #{tpu_custom_call.1} parent=5 // pred_fallthru
        _
    $region6: #{tpu_custom_call.1} parent=1 // loop_footer
      %s27 = sadd.s32 1, %s23
    $region7: #{tpu_custom_call.1} parent=1 // loop_footer_branch
      %22 = sbr.rel target = $region3
    $region8: #{tpu_custom_call.1} parent=1 // loop_exit
      _
    %482 = vsyncpa [#allocation3], 1
    %s483 = scalar_lea.sflag [#allocation3], 1
    %484 = vsyncpa %s483, 1
    %485 = vsyncpa [#allocation6], 1
    %s486 = scalar_lea.sflag [#allocation6], 1
    %487 = vsyncpa %s486, 1
    %488 = vsyncpa [#allocation4], 1
    %s489 = scalar_lea.sflag [#allocation4], 1
    %490 = vsyncpa %s489, 1
    %491 = vsyncpa [#allocation9], 1
    %s492 = scalar_lea.sflag [#allocation9], 1
    %493 = vsyncpa %s492, 1

</llo_original>
